<compile_context>
chip_gen: v7x
topology: tpu7x:2x2x1
jax: 0.10.0
libtpu: 0.0.40
codegen_flags: <defaults>
</compile_context>

<pallas_src>
import functools

import jax
import jax.numpy as jnp
from jax.experimental import pallas as pl
from jax.experimental.pallas import tpu as pltpu


# ----------------------------------------------------------------------------
# Kernel 1: qkv projection + head split  -> q, k, v in (B, H, S, hd) layout.
# ----------------------------------------------------------------------------
def qkv_head_split_kernel(x_ref, wqkv_ref, bqkv_ref, q_ref, k_ref, v_ref,
                          *, scale):
    _, H, tq, hd = q_ref.shape          # block (1, H, tq, hd)
    D = H * hd

    x = x_ref[0]                        # (tq, D), compute dtype
    qkv = jnp.dot(x, wqkv_ref[...], preferred_element_type=jnp.float32)
    qkv = qkv + bqkv_ref[...]           # (tq, 3D) f32, bias broadcast (1, 3D)

    def _emit(part, out_ref, mult=None):
        h = qkv[:, part * D:(part + 1) * D]          # (tq, D) f32
        if mult is not None:
            h = h * mult
        h = h.reshape(tq, H, hd)                     # (tq, H, hd)
        out_ref[0] = jnp.transpose(h, (1, 0, 2)).astype(out_ref.dtype)

    # Softmax scale folded into q here (once per element, in f32 before the
    # cast) so the attention kernel never scales the (H, tq, tk) logits tile
    # on every KV step.
    _emit(0, q_ref, scale)
    _emit(1, k_ref)
    _emit(2, v_ref)


# ----------------------------------------------------------------------------
# Kernel 2: flash attention (online softmax over KV tiles) + output projection.
# ----------------------------------------------------------------------------
def flash_attn_proj_kernel(q_ref, k_ref, v_ref, wproj_ref, bproj_ref, o_ref,
                           m_sc, l_sc, acc_sc):
    kv_idx = pl.program_id(2)

    @pl.when(kv_idx == 0)
    def _init():
        m_sc[...] = jnp.full(m_sc.shape, -jnp.inf, dtype=m_sc.dtype)
        l_sc[...] = jnp.zeros(l_sc.shape, dtype=l_sc.dtype)
        acc_sc[...] = jnp.zeros(acc_sc.shape, dtype=acc_sc.dtype)

    q = q_ref[0]                        # (H, tq, hd), compute dtype (pre-scaled)
    k = k_ref[0]                        # (H, tk, hd)
    v = v_ref[0]                        # (H, tk, hd)

    # Batched-over-heads QK^T -> (H, tq, tk) logits, f32 accumulation on MXU.
    s = jax.lax.dot_general(
        q, k, dimension_numbers=(((2,), (2,)), ((0,), (0,))),
        preferred_element_type=jnp.float32)

    m_prev = m_sc[...]
    m_new = jnp.maximum(m_prev, jnp.max(s, axis=-1, keepdims=True))
    alpha = jnp.exp(m_prev - m_new)                 # rescale of previous stats
    p = jnp.exp(s - m_new)                          # (H, tq, tk) f32, EUP

    l_sc[...] = alpha * l_sc[...] + jnp.sum(p, axis=-1, keepdims=True)

    # Batched-over-heads P @ V -> (H, tq, hd); probs cast to operand dtype,
    # accumulator kept f32.
    pv = jax.lax.dot_general(
        p.astype(v.dtype), v, dimension_numbers=(((2,), (1,)), ((0,), (0,))),
        preferred_element_type=jnp.float32)
    acc_sc[...] = alpha * acc_sc[...] + pv
    m_sc[...] = m_new

    @pl.when(kv_idx == pl.num_programs(2) - 1)
    def _finalize():
        H, tq, hd = acc_sc.shape
        l = l_sc[...]
        # EUP reciprocal + one Newton step (cheap, once per q tile) to keep
        # full f32 accuracy while staying off the VALU divide path.
        inv = pl.reciprocal(l, approx=True)
        inv = inv * (2.0 - l * inv)
        attn = acc_sc[...] * inv                    # (H, tq, hd) f32
        # Single layout fix per q tile: (H, tq, hd) -> (tq, D) lane-dense.
        attn = jnp.transpose(attn, (1, 0, 2)).reshape(tq, H * hd)
        proj = jnp.dot(attn.astype(wproj_ref.dtype), wproj_ref[...],
                       preferred_element_type=jnp.float32)
        proj = proj + bproj_ref[...]                # bias (1, D) broadcast
        o_ref[0] = proj.astype(o_ref.dtype)


# ----------------------------------------------------------------------------
# Wrapper
# ----------------------------------------------------------------------------
def _default_tile_target():
    # 256 fills the v6e/v7x 256x256 MXU; 128 is enough for v5e's 128x128 MXU.
    try:
        kind = jax.devices()[0].device_kind.lower()
        if "v5 lite" in kind or "v5e" in kind or "v5litepod" in kind:
            return 128
    except Exception:
        pass
    return 256


def _choose_tile(n, target):
    """Largest multiple of 8 <= target that divides n, else the full extent."""
    if n <= target:
        return n
    t = (target // 8) * 8
    while t >= 8:
        if n % t == 0:
            return t
        t -= 8
    return n


def multi_head_self_attention(x, wqkv, bqkv, wproj, bproj, num_heads,
                              *, q_tile=None, kv_tile=None, compute_dtype=None):
    B, S, D = x.shape
    assert D % num_heads == 0, "dim must be divisible by num_heads"
    hd = D // num_heads
    scale = float(hd) ** -0.5
    out_dtype = x.dtype

    # Compute dtype for MXU operands (bf16 recommended on v5e/v6e/v7x);
    # softmax stats and all accumulations stay f32 inside the kernels.
    cdt = compute_dtype if compute_dtype is not None else x.dtype
    xc = x.astype(cdt)
    wqkv_c = wqkv.astype(cdt)
    wproj_c = wproj.astype(cdt)
    bqkv2 = bqkv.reshape(1, 3 * D).astype(jnp.float32)
    bproj2 = bproj.reshape(1, D).astype(jnp.float32)

    target = q_tile if q_tile is not None else _default_tile_target()
    tq = _choose_tile(S, target)
    tk = _choose_tile(S, kv_tile if kv_tile is not None else target)

    vmem_limit = 64 * 1024 * 1024   # explicit budget; fits v7x's 64 MiB VMEM

    # Weights / biases: whole-array resident in VMEM (single buffer, no
    # per-grid-step double buffering since their index never changes).
    const_spec = pl.BlockSpec(memory_space=pltpu.MemorySpace.VMEM)

    # ---- Kernel 1: qkv projection + head split (scale folded into q) ----
    kernel1 = functools.partial(qkv_head_split_kernel, scale=scale)
    qkv_shape = jax.ShapeDtypeStruct((B, num_heads, S, hd), cdt)
    q, k, v = pl.pallas_call(
        kernel1,
        out_shape=(qkv_shape, qkv_shape, qkv_shape),
        grid=(B, S // tq),
        in_specs=[
            pl.BlockSpec((1, tq, D), lambda b, i: (b, i, 0)),   # x
            const_spec,                                         # W_qkv
            const_spec,                                         # b_qkv
        ],
        out_specs=[
            pl.BlockSpec((1, num_heads, tq, hd), lambda b, i: (b, 0, i, 0)),
            pl.BlockSpec((1, num_heads, tq, hd), lambda b, i: (b, 0, i, 0)),
            pl.BlockSpec((1, num_heads, tq, hd), lambda b, i: (b, 0, i, 0)),
        ],
        compiler_params=pltpu.CompilerParams(
            dimension_semantics=("parallel", "parallel"),
            vmem_limit_bytes=vmem_limit),
    )(xc, wqkv_c, bqkv2)

    # ---- Kernel 2: flash attention + fused output projection ------------
    out = pl.pallas_call(
        flash_attn_proj_kernel,
        out_shape=jax.ShapeDtypeStruct((B, S, D), out_dtype),
        grid=(B, S // tq, S // tk),
        in_specs=[
            pl.BlockSpec((1, num_heads, tq, hd), lambda b, i, j: (b, 0, i, 0)),
            pl.BlockSpec((1, num_heads, tk, hd), lambda b, i, j: (b, 0, j, 0)),
            pl.BlockSpec((1, num_heads, tk, hd), lambda b, i, j: (b, 0, j, 0)),
            const_spec,                                         # W_proj
            const_spec,                                         # b_proj
        ],
        out_specs=pl.BlockSpec((1, tq, D), lambda b, i, j: (b, i, 0)),
        scratch_shapes=[
            pltpu.VMEM((num_heads, tq, 1), jnp.float32),   # running max
            pltpu.VMEM((num_heads, tq, 1), jnp.float32),   # running sum
            pltpu.VMEM((num_heads, tq, hd), jnp.float32),  # accumulator
        ],
        compiler_params=pltpu.CompilerParams(
            dimension_semantics=("parallel", "parallel", "arbitrary"),
            vmem_limit_bytes=vmem_limit),
    )(q, k, v, wproj_c, bproj2)

    return out


# ----------------------------------------------------------------------------
# Pure-JAX reference (mirrors the PyTorch module's forward, f32 math)
# ----------------------------------------------------------------------------
def reference(x, wqkv, bqkv, wproj, bproj, num_heads):
    B, S, D = x.shape
    hd = D // num_heads
    scale = hd ** -0.5
    qkv = x @ wqkv + bqkv                                    # (B, S, 3D)
    qkv = qkv.reshape(B, S, 3, num_heads, hd)
    qkv = jnp.transpose(qkv, (2, 0, 3, 1, 4))                # (3, B, H, S, hd)
    q, k, v = qkv[0], qkv[1], qkv[2]
    attn = (q @ jnp.swapaxes(k, -2, -1)) * scale             # (B, H, S, S)
    attn = jax.nn.softmax(attn, axis=-1)
    out = attn @ v                                           # (B, H, S, hd)
    out = jnp.transpose(out, (0, 2, 1, 3)).reshape(B, S, D)
    return out @ wproj + bproj


if __name__ == "__main__":
    B, S, D, H = 2, 8, 32, 8

    key = jax.random.PRNGKey(0)
    kx, k1, k2, k3, k4 = jax.random.split(key, 5)

    x = jax.random.normal(kx, (B, S, D), dtype=jnp.float32)

    # Deterministic parameter init (PyTorch-Linear-style uniform bounds).
    bound = 1.0 / (D ** 0.5)
    wqkv = jax.random.uniform(k1, (D, 3 * D), jnp.float32, -bound, bound)
    bqkv = jax.random.uniform(k2, (3 * D,), jnp.float32, -bound, bound)
    wproj = jax.random.uniform(k3, (D, D), jnp.float32, -bound, bound)
    bproj = jax.random.uniform(k4, (D,), jnp.float32, -bound, bound)

    ref = reference(x, wqkv, bqkv, wproj, bproj, H)

    # f32 compute path: should match the f32 reference tightly.
    out = multi_head_self_attention(x, wqkv, bqkv, wproj, bproj, H)
    out = jax.block_until_ready(out)
    assert out.shape == (B, S, D)
    assert jnp.allclose(out, ref, atol=1e-3, rtol=1e-3), "f32 mismatch vs reference"

    # bf16-operand / f32-accumulate path (the MXU-friendly configuration).
    out_bf16 = multi_head_self_attention(x, wqkv, bqkv, wproj, bproj, H,
                                         compute_dtype=jnp.bfloat16)
    out_bf16 = jax.block_until_ready(out_bf16)
    assert out_bf16.shape == (B, S, D)
    assert jnp.allclose(out_bf16.astype(jnp.float32), ref,
                        atol=5e-2, rtol=5e-2), "bf16 mismatch vs reference"

    print("KERNEL_OK")
</pallas_src>

<mosaic_0001>
module attributes {stable_mosaic.version = 11 : i64} {
  func.func @qkv_head_split_kernel(%arg0: i32, %arg1: i32, %arg2: memref<1x8x32xf32, #tpu.memory_space<vmem>>, %arg3: memref<32x96xf32, #tpu.memory_space<vmem>>, %arg4: memref<1x96xf32, #tpu.memory_space<vmem>>, %arg5: memref<1x8x8x4xf32, #tpu.memory_space<vmem>>, %arg6: memref<1x8x8x4xf32, #tpu.memory_space<vmem>>, %arg7: memref<1x8x8x4xf32, #tpu.memory_space<vmem>>) attributes {dimension_semantics = [#tpu.dimension_semantics<parallel>, #tpu.dimension_semantics<parallel>], iteration_bounds = array<i64: 2, 1>, scalar_prefetch = 0 : i64, scratch_operands = 0 : i64, tpu.core_type = #tpu.core_type<tc>, window_params = [{transform_indices = @transform_0, window_bounds = array<i64: 1, 8, 32>}, {pipeline_mode = #tpu.pipeline_mode<synchronous>, transform_indices = @transform_1, window_bounds = array<i64: 32, 96>}, {pipeline_mode = #tpu.pipeline_mode<synchronous>, transform_indices = @transform_2, window_bounds = array<i64: 1, 96>}, {transform_indices = @transform_3, window_bounds = array<i64: 1, 8, 8, 4>}, {transform_indices = @transform_4, window_bounds = array<i64: 1, 8, 8, 4>}, {transform_indices = @transform_5, window_bounds = array<i64: 1, 8, 8, 4>}]} {
    %c0 = arith.constant 0 : index
    %c0_0 = arith.constant 0 : index
    %c0_1 = arith.constant 0 : index
    %0 = vector.load %arg2[%c0, %c0_0, %c0_1] : memref<1x8x32xf32, #tpu.memory_space<vmem>>, vector<1x8x32xf32>
    %1 = vector.shape_cast %0 : vector<1x8x32xf32> to vector<8x32xf32>
    %c0_2 = arith.constant 0 : index
    %c0_3 = arith.constant 0 : index
    %2 = vector.load %arg3[%c0_2, %c0_3] : memref<32x96xf32, #tpu.memory_space<vmem>>, vector<32x96xf32>
    %cst = arith.constant dense<0.000000e+00> : vector<8x96xf32>
    %3 = tpu.matmul %1, %2, %cst {dimension_numbers = #tpu.dot_dimension_numbers<[1], [0], [0], [1], [0, 0, 1, 1], [], []>} : vector<8x32xf32>, vector<32x96xf32>, vector<8x96xf32> -> vector<8x96xf32>
    %c0_4 = arith.constant 0 : index
    %c0_5 = arith.constant 0 : index
    %4 = vector.load %arg4[%c0_4, %c0_5] : memref<1x96xf32, #tpu.memory_space<vmem>>, vector<1x96xf32>
    %5 = vector.broadcast %4 : vector<1x96xf32> to vector<8x96xf32>
    %6 = arith.addf %3, %5 : vector<8x96xf32>
    %7 = vector.extract_strided_slice %6 {offsets = [0, 0], sizes = [8, 32], strides = [1, 1]} : vector<8x96xf32> to vector<8x32xf32>
    %cst_6 = arith.constant 5.000000e-01 : f32
    %8 = vector.broadcast %cst_6 : f32 to vector<8x32xf32>
    %9 = arith.mulf %7, %8 : vector<8x32xf32>
    %10 = vector.shape_cast %9 : vector<8x32xf32> to vector<8x8x4xf32>
    %11 = tpu.transpose %10, [1, 0, 2] : vector<8x8x4xf32> -> vector<8x8x4xf32>
    %c0_7 = arith.constant 0 : index
    %c0_8 = arith.constant 0 : index
    %c0_9 = arith.constant 0 : index
    %c0_10 = arith.constant 0 : index
    %12 = vector.load %arg5[%c0_7, %c0_8, %c0_9, %c0_10] : memref<1x8x8x4xf32, #tpu.memory_space<vmem>>, vector<1x8x8x4xf32>
    %13 = vector.shape_cast %12 : vector<1x8x8x4xf32> to vector<8x8x4xf32>
    %14 = vector.shape_cast %11 : vector<8x8x4xf32> to vector<1x8x8x4xf32>
    tpu.vector_store %arg5[%c0_7, %c0_8, %c0_9, %c0_10], %14 {strides = array<i32>} : memref<1x8x8x4xf32, #tpu.memory_space<vmem>>, vector<1x8x8x4xf32>,
    %15 = vector.extract_strided_slice %6 {offsets = [0, 32], sizes = [8, 32], strides = [1, 1]} : vector<8x96xf32> to vector<8x32xf32>
    %16 = vector.shape_cast %15 : vector<8x32xf32> to vector<8x8x4xf32>
    %17 = tpu.transpose %16, [1, 0, 2] : vector<8x8x4xf32> -> vector<8x8x4xf32>
    %c0_11 = arith.constant 0 : index
    %c0_12 = arith.constant 0 : index
    %c0_13 = arith.constant 0 : index
    %c0_14 = arith.constant 0 : index
    %18 = vector.load %arg6[%c0_11, %c0_12, %c0_13, %c0_14] : memref<1x8x8x4xf32, #tpu.memory_space<vmem>>, vector<1x8x8x4xf32>
    %19 = vector.shape_cast %18 : vector<1x8x8x4xf32> to vector<8x8x4xf32>
    %20 = vector.shape_cast %17 : vector<8x8x4xf32> to vector<1x8x8x4xf32>
    tpu.vector_store %arg6[%c0_11, %c0_12, %c0_13, %c0_14], %20 {strides = array<i32>} : memref<1x8x8x4xf32, #tpu.memory_space<vmem>>, vector<1x8x8x4xf32>,
    %21 = vector.extract_strided_slice %6 {offsets = [0, 64], sizes = [8, 32], strides = [1, 1]} : vector<8x96xf32> to vector<8x32xf32>
    %22 = vector.shape_cast %21 : vector<8x32xf32> to vector<8x8x4xf32>
    %23 = tpu.transpose %22, [1, 0, 2] : vector<8x8x4xf32> -> vector<8x8x4xf32>
    %c0_15 = arith.constant 0 : index
    %c0_16 = arith.constant 0 : index
    %c0_17 = arith.constant 0 : index
    %c0_18 = arith.constant 0 : index
    %24 = vector.load %arg7[%c0_15, %c0_16, %c0_17, %c0_18] : memref<1x8x8x4xf32, #tpu.memory_space<vmem>>, vector<1x8x8x4xf32>
    %25 = vector.shape_cast %24 : vector<1x8x8x4xf32> to vector<8x8x4xf32>
    %26 = vector.shape_cast %23 : vector<8x8x4xf32> to vector<1x8x8x4xf32>
    tpu.vector_store %arg7[%c0_15, %c0_16, %c0_17, %c0_18], %26 {strides = array<i32>} : memref<1x8x8x4xf32, #tpu.memory_space<vmem>>, vector<1x8x8x4xf32>,
    return
  }
  func.func @transform_0(%arg0: i32, %arg1: i32) -> (i32, i32, i32) {
    %c0_i32 = arith.constant 0 : i32
    %c0_i32_0 = arith.constant 0 : i32
    return %arg0, %arg1, %c0_i32 : i32, i32, i32
  }
  func.func @transform_1(%arg0: i32, %arg1: i32) -> (i32, i32) {
    %c0_i32 = arith.constant 0 : i32
    %c0_i32_0 = arith.constant 0 : i32
    %c0_i32_1 = arith.constant 0 : i32
    return %c0_i32, %c0_i32_0 : i32, i32
  }
  func.func @transform_2(%arg0: i32, %arg1: i32) -> (i32, i32) {
    %c0_i32 = arith.constant 0 : i32
    %c0_i32_0 = arith.constant 0 : i32
    %c0_i32_1 = arith.constant 0 : i32
    return %c0_i32, %c0_i32_0 : i32, i32
  }
  func.func @transform_3(%arg0: i32, %arg1: i32) -> (i32, i32, i32, i32) {
    %c0_i32 = arith.constant 0 : i32
    %c0_i32_0 = arith.constant 0 : i32
    %c0_i32_1 = arith.constant 0 : i32
    return %arg0, %c0_i32, %arg1, %c0_i32_0 : i32, i32, i32, i32
  }
  func.func @transform_4(%arg0: i32, %arg1: i32) -> (i32, i32, i32, i32) {
    %c0_i32 = arith.constant 0 : i32
    %c0_i32_0 = arith.constant 0 : i32
    %c0_i32_1 = arith.constant 0 : i32
    return %arg0, %c0_i32, %arg1, %c0_i32_0 : i32, i32, i32, i32
  }
  func.func @transform_5(%arg0: i32, %arg1: i32) -> (i32, i32, i32, i32) {
    %c0_i32 = arith.constant 0 : i32
    %c0_i32_0 = arith.constant 0 : i32
    %c0_i32_1 = arith.constant 0 : i32
    return %arg0, %c0_i32, %arg1, %c0_i32_0 : i32, i32, i32, i32
  }
}

</mosaic_0001>

<llo_original>
// kernel: tpu_custom_call.1
$region0: #{tpu_custom_call.1}
  #allocation0 [shape = 'u32[]', space=smem, size = 0x4, offset = 0x4, fixed_abs, tag = 'smem constant byte address 0x4 - core index']
  #allocation1 [shape = 'u32[144,128]{1,0:T(1,128)}', space=vmem, size = 0x12000, scoped, tag = 'internal scratch']
  %s0 = inlined_call_operand.hbm [shape: f32[2,8,32], index: 0, kind: input, shape index: {}]
  %s1 = inlined_call_operand.hbm [shape: f32[32,96], index: 1, kind: input, shape index: {}]
  %s2 = inlined_call_operand.hbm [shape: f32[1,96], index: 2, kind: input, shape index: {}]
  %s3 = inlined_call_operand.hbm [shape: f32[2,8,8,4], index: 3, kind: output, shape index: {0}]
  %s4 = inlined_call_operand.hbm [shape: f32[2,8,8,4], index: 4, kind: output, shape index: {1}]
  %s5 = inlined_call_operand.hbm [shape: f32[2,8,8,4], index: 5, kind: output, shape index: {2}]
  %6 = xla_tuple %s3, %s4, %s5
  %s7 = sld [smem:[#allocation0]]
  $region73: #{tpu_custom_call.1} parent=0
    _
  %s9 = ssub.s32 1, %s7
  %s10 = scalar_select 0, %s9, %s7
  $region1: #{tpu_custom_call.1} parent=0
    #allocation2 [shape = 'u8[8192]{0}', space=vmem, size = 0x2000, scoped, tag = 'input window, operand 0']
    #allocation3 [shape = 's32[2]{0}', space=sflag, size = 0x8, scoped, tag = 'scoped memory for tpu_custom_call.1']
    #allocation4 [shape = 's32[2]{0}', space=sflag, size = 0x8, scoped, tag = 'scoped memory for tpu_custom_call.1']
    #allocation5 [shape = 'u8[16384]{0}', space=vmem, size = 0x4000, scoped, tag = 'input window, operand 1, single buffered']
    #allocation6 [shape = 's32[1]{0}', space=sflag, size = 0x4, scoped, tag = 'scoped memory for tpu_custom_call.1']
    #allocation7 [shape = 'u8[512]{0}', space=vmem, size = 0x400, scoped, tag = 'input window, operand 2, single buffered']
    #allocation8 [shape = 'u8[65536]{0}', space=vmem, size = 0x10000, scoped, tag = 'output window, operand 0']
    #allocation9 [shape = 'u8[65536]{0}', space=vmem, size = 0x10000, scoped, tag = 'output window, operand 1']
    #allocation10 [shape = 's32[2]{0}', space=sflag, size = 0x8, scoped, tag = 'scoped memory for tpu_custom_call.1']
    #allocation11 [shape = 'u8[65536]{0}', space=vmem, size = 0x10000, scoped, tag = 'output window, operand 2']
    %11 = vsyncpa [#allocation3], 0
    %s12 = scalar_lea.sflag [#allocation3], 1
    %13 = vsyncpa %s12, 0
    %14 = vsyncpa [#allocation6], 0
    %15 = vsyncpa [#allocation4], 0
    %s16 = scalar_lea.sflag [#allocation4], 1
    %17 = vsyncpa %s16, 0
    %18 = vsyncpa [#allocation10], 0
    %s19 = scalar_lea.sflag [#allocation10], 1
    %20 = vsyncpa %s19, 0
    loop: start=0, step=1, limit=4
    $region2: #{tpu_custom_call.1} parent=1 // loop_pre_header
      _
    $region3: #{tpu_custom_call.1} parent=1 // loop_header
      %s22 = sphi 0, %s26
      %p23 = scmp.ge.s32.totalorder %s22, 4
      %s29 = sphi 0, %s41
      %s30 = sphi 0, %s37
      %s31 = sphi 0, %s29
      %s32 = sphi 0, %s30
      %s33 = sphi 0, %s31
      %s34 = sphi 0, %s32
      %s46 = sphi 0, %s48
      %s49 = sphi 0, %s46
      %s50 = sphi 0, %s49
      %s66 = sphi 0, %s50
      %s70 = sphi 0, %s70
      %s72 = sphi 0, %s70
      %s73 = sphi 0, %s72
      %s87 = sphi 0, %s73
      %s91 = sphi 0, %s91
      %s93 = sphi 0, %s91
      %s94 = sphi 0, %s93
      %s108 = sphi 0, %s94
      %s116 = sphi 0, %s118
      %s119 = sphi 0, %s116
      %s120 = sphi 0, %s119
      %s136 = sphi 0, %s120
      %s144 = sphi 0, %s146
      %s147 = sphi 0, %s144
      %s148 = sphi 0, %s147
      %s164 = sphi 0, %s148
      %s172 = sphi 0, %s174
      %s175 = sphi 0, %s172
      %s176 = sphi 0, %s175
      %s192 = sphi 0, %s176
    $region4: #{tpu_custom_call.1} parent=1 // loop_header_branch
      %25 = sbr.rel (%p23) target = $region8
    $region5: #{tpu_custom_call.1} parent=1 // loop_body
      %s27 = ssub.s32 %s22, 1
      %s28 = ssub.s32 %s22, 2
      %s35 = sadd.s32 1, %s30
      %p36 = scmp.ge.s32.totalorder %s35, 1
      %s37 = scalar_select %p36, 0, %s35
      %s38 = sadd.s32 1, %s29
      %s39 = scalar_select %p36, %s38, %s29
      %p40 = scmp.ge.s32.totalorder %s39, 2
      %s41 = scalar_select %p40, 0, %s39
      %s42 = ssub.s32 %s29, %s41
      %s43 = ssub.s32 %s30, %s37
      %s44 = sor.u32 %s42, %s43
      %p45 = scmp.eq.s32.totalorder %s44, 0
      %s47 = sadd.s32 %s46, 1
      %s48 = scalar_select %p45, %s46, %s47
      %p51 = pneg %p45
      %p52 = scmp.eq.s32.totalorder %s22, 1
      %p53 = por %p51, %p52
      %p54 = scmp.ne.s32.totalorder %s46, %s49
      %p55 = scmp.eq.s32.totalorder %s22, 0
      %p56 = por %p54, %p55
      %p57 = scmp.ne.s32.totalorder %s46, %s49
      %p58 = scmp.eq.s32.totalorder %s27, 1
      %p59 = por %p57, %p58
      %p60 = scmp.ne.s32.totalorder %s49, %s50
      %p61 = scmp.eq.s32.totalorder %s27, 0
      %p62 = por %p60, %p61
      %p63 = scmp.ne.s32.totalorder %s49, %s50
      %p64 = scmp.eq.s32.totalorder %s28, 1
      %p65 = por %p63, %p64
      %p67 = scmp.ne.s32.totalorder %s50, %s66
      %p68 = scmp.eq.s32.totalorder %s28, 0
      %p69 = por %p67, %p68
      %s71 = sadd.s32 %s70, 1
      %p74 = scmp.eq.s32.totalorder %s22, 1
      %p75 = scmp.ne.s32.totalorder %s70, %s72
      %p76 = scmp.eq.s32.totalorder %s22, 0
      %p77 = por %p75, %p76
      %p78 = scmp.ne.s32.totalorder %s70, %s72
      %p79 = scmp.eq.s32.totalorder %s27, 1
      %p80 = por %p78, %p79
      %p81 = scmp.ne.s32.totalorder %s72, %s73
      %p82 = scmp.eq.s32.totalorder %s27, 0
      %p83 = por %p81, %p82
      %p84 = scmp.ne.s32.totalorder %s72, %s73
      %p85 = scmp.eq.s32.totalorder %s28, 1
      %p86 = por %p84, %p85
      %p88 = scmp.ne.s32.totalorder %s73, %s87
      %p89 = scmp.eq.s32.totalorder %s28, 0
      %p90 = por %p88, %p89
      %s92 = sadd.s32 %s91, 1
      %p95 = scmp.eq.s32.totalorder %s22, 1
      %p96 = scmp.ne.s32.totalorder %s91, %s93
      %p97 = scmp.eq.s32.totalorder %s22, 0
      %p98 = por %p96, %p97
      %p99 = scmp.ne.s32.totalorder %s91, %s93
      %p100 = scmp.eq.s32.totalorder %s27, 1
      %p101 = por %p99, %p100
      %p102 = scmp.ne.s32.totalorder %s93, %s94
      %p103 = scmp.eq.s32.totalorder %s27, 0
      %p104 = por %p102, %p103
      %p105 = scmp.ne.s32.totalorder %s93, %s94
      %p106 = scmp.eq.s32.totalorder %s28, 1
      %p107 = por %p105, %p106
      %p109 = scmp.ne.s32.totalorder %s94, %s108
      %p110 = scmp.eq.s32.totalorder %s28, 0
      %p111 = por %p109, %p110
      %s112 = ssub.s32 %s29, %s41
      %s113 = ssub.s32 %s30, %s37
      %s114 = sor.u32 %s112, %s113
      %p115 = scmp.eq.s32.totalorder %s114, 0
      %s117 = sadd.s32 %s116, 1
      %s118 = scalar_select %p115, %s116, %s117
      %p121 = pneg %p115
      %p122 = scmp.eq.s32.totalorder %s22, 1
      %p123 = por %p121, %p122
      %p124 = scmp.ne.s32.totalorder %s116, %s119
      %p125 = scmp.eq.s32.totalorder %s22, 0
      %p126 = por %p124, %p125
      %p127 = scmp.ne.s32.totalorder %s116, %s119
      %p128 = scmp.eq.s32.totalorder %s27, 1
      %p129 = por %p127, %p128
      %p130 = scmp.ne.s32.totalorder %s119, %s120
      %p131 = scmp.eq.s32.totalorder %s27, 0
      %p132 = por %p130, %p131
      %p133 = scmp.ne.s32.totalorder %s119, %s120
      %p134 = scmp.eq.s32.totalorder %s28, 1
      %p135 = por %p133, %p134
      %p137 = scmp.ne.s32.totalorder %s120, %s136
      %p138 = scmp.eq.s32.totalorder %s28, 0
      %p139 = por %p137, %p138
      %s140 = ssub.s32 %s29, %s41
      %s141 = ssub.s32 %s30, %s37
      %s142 = sor.u32 %s140, %s141
      %p143 = scmp.eq.s32.totalorder %s142, 0
      %s145 = sadd.s32 %s144, 1
      %s146 = scalar_select %p143, %s144, %s145
      %p149 = pneg %p143
      %p150 = scmp.eq.s32.totalorder %s22, 1
      %p151 = por %p149, %p150
      %p152 = scmp.ne.s32.totalorder %s144, %s147
      %p153 = scmp.eq.s32.totalorder %s22, 0
      %p154 = por %p152, %p153
      %p155 = scmp.ne.s32.totalorder %s144, %s147
      %p156 = scmp.eq.s32.totalorder %s27, 1
      %p157 = por %p155, %p156
      %p158 = scmp.ne.s32.totalorder %s147, %s148
      %p159 = scmp.eq.s32.totalorder %s27, 0
      %p160 = por %p158, %p159
      %p161 = scmp.ne.s32.totalorder %s147, %s148
      %p162 = scmp.eq.s32.totalorder %s28, 1
      %p163 = por %p161, %p162
      %p165 = scmp.ne.s32.totalorder %s148, %s164
      %p166 = scmp.eq.s32.totalorder %s28, 0
      %p167 = por %p165, %p166
      %s168 = ssub.s32 %s29, %s41
      %s169 = ssub.s32 %s30, %s37
      %s170 = sor.u32 %s168, %s169
      %p171 = scmp.eq.s32.totalorder %s170, 0
      %s173 = sadd.s32 %s172, 1
      %s174 = scalar_select %p171, %s172, %s173
      %p177 = pneg %p171
      %p178 = scmp.eq.s32.totalorder %s22, 1
      %p179 = por %p177, %p178
      %p180 = scmp.ne.s32.totalorder %s172, %s175
      %p181 = scmp.eq.s32.totalorder %s22, 0
      %p182 = por %p180, %p181
      %p183 = scmp.ne.s32.totalorder %s172, %s175
      %p184 = scmp.eq.s32.totalorder %s27, 1
      %p185 = por %p183, %p184
      %p186 = scmp.ne.s32.totalorder %s175, %s176
      %p187 = scmp.eq.s32.totalorder %s27, 0
      %p188 = por %p186, %p187
      %p189 = scmp.ne.s32.totalorder %s175, %s176
      %p190 = scmp.eq.s32.totalorder %s28, 1
      %p191 = por %p189, %p190
      %p193 = scmp.ne.s32.totalorder %s176, %s192
      %p194 = scmp.eq.s32.totalorder %s28, 0
      %p195 = por %p193, %p194
      %p196 = scmp.le.s32.totalorder 1, %s22
      %p197 = scmp.lt.s32.totalorder %s22, 3
      %p198 = pnand %p196, %p197
      %p199 = pneg %p198
      // Predicated region
      $region9: #{tpu_custom_call.1} parent=5 // pred_check
        _
      $region10: #{tpu_custom_call.1} parent=5 // pred_check_branch
        %201 = sbr.rel (%p198) target = $region12
      $region11: #{tpu_custom_call.1} parent=5 // pred_region
        %s202 = ssub.s32 %s22, 1
        // Predicated region
        $region13: #{tpu_custom_call.1} parent=11 // pred_check
          %p203 = pneg %p83
        $region14: #{tpu_custom_call.1} parent=11 // pred_check_branch
          %205 = sbr.rel (%p203) target = $region16
        $region15: #{tpu_custom_call.1} parent=11 // pred_region
          %s207 = ssub.s32 512, 512
          %208 = vsyncadd [#allocation6], %s207
          %s209 = sshll.u32 [#allocation5], 4
          %s210 = int_to_ptr.vmem [resolvable:$true] %s209
          %215 = dma.hbm_to_vmem [thread:$0]  %s1, 512, %s210, [#allocation6], 128, 128, 8
        $region16: #{tpu_custom_call.1} parent=11 // pred_fallthru
          _
        // Predicated region
        $region17: #{tpu_custom_call.1} parent=11 // pred_check
          %p216 = pneg %p104
        $region18: #{tpu_custom_call.1} parent=11 // pred_check_branch
          %218 = sbr.rel (%p216) target = $region20
        $region19: #{tpu_custom_call.1} parent=11 // pred_region
          %s220 = ssub.s32 16, 16
          %221 = vsyncadd [#allocation6], %s220
          %s223 = sshll.u32 [#allocation7], 4
          %s224 = int_to_ptr.vmem [resolvable:$true] %s223
          %226 = dma.hbm_to_vmem [thread:$0]  %s2, 16, %s224, [#allocation6]
        $region20: #{tpu_custom_call.1} parent=11 // pred_fallthru
          _
      $region12: #{tpu_custom_call.1} parent=5 // pred_fallthru
        _
      %p227 = scmp.lt.s32.totalorder %s22, 2
      // Predicated region
      $region21: #{tpu_custom_call.1} parent=5 // pred_check
        %p228 = pneg %p227
      $region22: #{tpu_custom_call.1} parent=5 // pred_check_branch
        %230 = sbr.rel (%p228) target = $region24
      $region23: #{tpu_custom_call.1} parent=5 // pred_region
        // Predicated region
        $region25: #{tpu_custom_call.1} parent=23 // pred_check
          %p231 = pneg %p56
        $region26: #{tpu_custom_call.1} parent=23 // pred_check_branch
          %233 = sbr.rel (%p231) target = $region28
        $region27: #{tpu_custom_call.1} parent=23 // pred_region
          %s234 = sand.u32 %s46, 1
          %s235 = scalar_lea.sflag [#allocation3], %s234
          %s236 = sand.u32 %s46, 1
          %s237 = smul.addr %s236, 8
          %s238 = scalar_lea.vmem [#allocation2], %s237
          %s240 = ssub.s32 128, 128
          %241 = vsyncadd %s235, %s240
          %s242 = sadd.s32 %s30, %s29
          %s243 = smul.addr %s242, 128
          %s244 = scalar_lea.hbm %s0, %s243
          %s246 = sshll.u32 %s238, 4
          %s247 = int_to_ptr.vmem [resolvable:$true] %s246
          %249 = dma.hbm_to_vmem [thread:$0]  %s244, 128, %s247, %s235
        $region28: #{tpu_custom_call.1} parent=23 // pred_fallthru
          _
      $region24: #{tpu_custom_call.1} parent=5 // pred_fallthru
        _
      %p250 = scmp.le.s32.totalorder 1, %s22
      %p251 = scmp.lt.s32.totalorder %s22, 3
      %p252 = pnand %p250, %p251
      %p253 = pneg %p252
      // Predicated region
      $region29: #{tpu_custom_call.1} parent=5 // pred_check
        _
      $region30: #{tpu_custom_call.1} parent=5 // pred_check_branch
        %255 = sbr.rel (%p252) target = $region32
      $region31: #{tpu_custom_call.1} parent=5 // pred_region
        %s256 = ssub.s32 %s22, 1
        %s257 = sand.u32 %s49, 1
        %s258 = scalar_lea.sflag [#allocation3], %s257
        %s259 = sand.u32 %s49, 1
        %s260 = smul.addr %s259, 8
        %s261 = scalar_lea.vmem [#allocation2], %s260
        // Predicated region
        $region33: #{tpu_custom_call.1} parent=31 // pred_check
          %p262 = pneg %p62
        $region34: #{tpu_custom_call.1} parent=31 // pred_check_branch
          %264 = sbr.rel (%p262) target = $region36
        $region35: #{tpu_custom_call.1} parent=31 // pred_region
          %265 = dma.done %s258, 128
        $region36: #{tpu_custom_call.1} parent=31 // pred_fallthru
          _
        // Predicated region
        $region37: #{tpu_custom_call.1} parent=31 // pred_check
          %p266 = pneg %p83
        $region38: #{tpu_custom_call.1} parent=31 // pred_check_branch
          %268 = sbr.rel (%p266) target = $region40
        $region39: #{tpu_custom_call.1} parent=31 // pred_region
          %269 = dma.done [#allocation6], 512
        $region40: #{tpu_custom_call.1} parent=31 // pred_fallthru
          _
        // Predicated region
        $region41: #{tpu_custom_call.1} parent=31 // pred_check
          %p270 = pneg %p104
        $region42: #{tpu_custom_call.1} parent=31 // pred_check_branch
          %272 = sbr.rel (%p270) target = $region44
        $region43: #{tpu_custom_call.1} parent=31 // pred_region
          %273 = dma.done [#allocation6], 16
        $region44: #{tpu_custom_call.1} parent=31 // pred_fallthru
          _
        %s274 = sand.u32 %s49, 1
        %s275 = scalar_lea.sflag [#allocation3], %s274
        %s276 = sand.u32 %s49, 1
        %s277 = smul.addr %s276, 8
        %s278 = scalar_lea.vmem [#allocation2], %s277
        %p279 = pneg %p62
        %p280 = pneg %p59
        %p281 = pneg %p83
        %p282 = pneg %p80
        %p283 = pneg %p104
        %p284 = pneg %p101
        %p285 = pneg %p132
        %p286 = pneg %p129
        %s287 = sand.u32 %s119, 1
        %s288 = scalar_lea.sflag [#allocation4], %s287
        %s289 = sand.u32 %s119, 1
        %s290 = smul.addr %s289, 64
        %s291 = scalar_lea.vmem [#allocation8], %s290
        %p292 = pneg %p160
        %p293 = pneg %p157
        %s294 = sand.u32 %s27, 1
        %s295 = scalar_lea.sflag [#allocation10], %s294
        %s296 = sand.u32 %s147, 1
        %s297 = smul.addr %s296, 64
        %s298 = scalar_lea.vmem [#allocation9], %s297
        %p299 = pneg %p188
        %p300 = pneg %p185
        %s301 = sand.u32 %s27, 1
        %s302 = scalar_lea.sflag [#allocation10], %s301
        %s303 = sand.u32 %s175, 1
        %s304 = smul.addr %s303, 64
        %s305 = scalar_lea.vmem [#allocation11], %s304
        %v306 = vld [vmem:[%s261] sm:$0xff]
        %v307 = vld [vmem:[#allocation5] sm:$0xff]
        %v308 = vld [vmem:[#allocation5 + $0x8] sm:$0xff]
        %v309 = vld [vmem:[#allocation5 + $0x10] sm:$0xff]
        %v310 = vld [vmem:[#allocation5 + $0x18] sm:$0xff]
        %v311 = vld [vmem:[#allocation7] sm:$0x1]
        %v313 = vlaneseq
        %v314 = vshrl.u32 %v313, 7
        %v315 = vsub.s32 0, %v314
        %v316 = vrot.slane %v311, %v315
        %vm318 = vcmask 261120
        %v320 = vsel %vm318, %v306, 0
        %322 = vmatprep.subr.mxu0 0.0
        %323 = vmatpush1.msra.mxu0 %v307
        %324 = vmatprep.subr.mxu0 0.0
        %325 = vmatpush1.msra.mxu0 %v308
        %326 = vmatprep.subr.mxu0 0.0
        %327 = vmatpush1.msra.mxu0 %v309
        %328 = vmatprep.subr.mxu0 0.0
        %329 = vmatpush1.msra.mxu0 %v310
        %330 = vmatprep.subr.mxu0 0.0
        %331 = vmatpush1.msra.mxu0 0.0
        %332 = vmatprep.subr.mxu0 0.0
        %333 = vmatpush1.msra.mxu0 0.0
        %334 = vmatprep.subr.mxu0 0.0
        %335 = vmatpush1.msra.mxu0 0.0
        %336 = vmatprep.subr.mxu0 0.0
        %337 = vmatpush1.msra.mxu0 0.0
        %338 = vmatprep.subr.mxu0 0.0
        %339 = vmatpush1.msra.mxu0 0.0
        %340 = vmatprep.subr.mxu0 0.0
        %341 = vmatpush1.msra.mxu0 0.0
        %342 = vmatprep.subr.mxu0 0.0
        %343 = vmatpush1.msra.mxu0 0.0
        %344 = vmatprep.subr.mxu0 0.0
        %345 = vmatpush1.msra.mxu0 0.0
        %346 = vmatprep.subr.mxu0 0.0
        %347 = vmatpush1.msra.mxu0 0.0
        %348 = vmatprep.subr.mxu0 0.0
        %349 = vmatpush1.msra.mxu0 0.0
        %350 = vmatprep.subr.mxu0 0.0
        %351 = vmatpush1.msra.mxu0 0.0
        %352 = vmatprep.subr.mxu0 0.0
        %353 = vmatpush1.msra.mxu0 0.0
        %354 = vmatprep.subr.mxu0 0.0
        %355 = vmatpush1.msra.mxu0 0.0
        %356 = vmatprep.subr.mxu0 0.0
        %357 = vmatpush1.msra.mxu0 0.0
        %358 = vmatprep.subr.mxu0 0.0
        %359 = vmatpush1.msra.mxu0 0.0
        %360 = vmatprep.subr.mxu0 0.0
        %361 = vmatpush1.msra.mxu0 0.0
        %362 = vmatprep.subr.mxu0 0.0
        %363 = vmatpush1.msra.mxu0 0.0
        %364 = vmatprep.subr.mxu0 0.0
        %365 = vmatpush1.msra.mxu0 0.0
        %366 = vmatprep.subr.mxu0 0.0
        %367 = vmatpush1.msra.mxu0 0.0
        %368 = vmatprep.subr.mxu0 0.0
        %369 = vmatpush1.msra.mxu0 0.0
        %370 = vmatprep.subr.mxu0 0.0
        %371 = vmatpush1.msra.mxu0 0.0
        %372 = vmatprep.subr.mxu0 0.0
        %373 = vmatpush1.msra.mxu0 0.0
        %374 = vmatprep.subr.mxu0 0.0
        %375 = vmatpush1.msra.mxu0 0.0
        %376 = vmatprep.subr.mxu0 0.0
        %377 = vmatpush1.msra.mxu0 0.0
        %378 = vmatprep.subr.mxu0 0.0
        %379 = vmatpush1.msra.mxu0 0.0
        %380 = vmatprep.subr.mxu0 0.0
        %381 = vmatpush1.msra.mxu0 0.0
        %382 = vmatprep.subr.mxu0 0.0
        %383 = vmatpush1.msra.mxu0 0.0
        %384 = vmatprep.subr.mxu0 0.0
        %385 = vmatpush1.msra.mxu0 0.0
        %386 = vmatprep.mubr.f32.mxu0 0.0
        %387 = vmatmul.mubr.f32.gmra.mrb[0].mxu0 %v320
        %v388 = vpop.f32.mrb[0].mxu0
        %v389 = vadd.f32 %v316, %v388
        %v390 = vpop.f32.mrb[0].mxu0
        %391 = vdwg.mxu0
        %v392 = vmul.f32 %v389, 0.5
        %394 = vrot.lane.b32.xlu0 %v392, 124
        %v395 = vpop.permute.xlu0 %394
        %397 = vrot.lane.b32.xlu0 %v392, 120
        %v398 = vpop.permute.xlu0 %397
        %400 = vrot.lane.b32.xlu0 %v392, 116
        %v401 = vpop.permute.xlu0 %400
        %403 = vrot.lane.b32.xlu0 %v392, 112
        %v404 = vpop.permute.xlu0 %403
        %406 = vrot.lane.b32.xlu0 %v392, 108
        %v407 = vpop.permute.xlu0 %406
        %409 = vrot.lane.b32.xlu0 %v392, 104
        %v410 = vpop.permute.xlu0 %409
        %412 = vrot.lane.b32.xlu0 %v392, 100
        %v413 = vpop.permute.xlu0 %412
        %v415 = vcombine.low %v392, %v398
        %v416 = vcombine.high %v392, %v398
        %v418 = vunpack.c.l.s4 1983009808
        %v419 = vunpack.c.0.s8 %v418
        %v420 = vlaneseq
        %v421 = vshrl.u32 %v420, 7
        %v422 = vsub.s32 %v419, %v421
        %v423 = vrot.slane %v415, %v422
        %v425 = vunpack.c.l.s4 1983009808
        %v426 = vunpack.c.0.s8 %v425
        %v427 = vlaneseq
        %v428 = vshrl.u32 %v427, 7
        %v429 = vsub.s32 %v426, %v428
        %v430 = vrot.slane %v416, %v429
        %v431 = vcombine.low %v395, %v401
        %v432 = vcombine.high %v395, %v401
        %v434 = vunpack.c.l.s4 1983009808
        %v435 = vunpack.c.0.s8 %v434
        %v436 = vlaneseq
        %v437 = vshrl.u32 %v436, 7
        %v438 = vsub.s32 %v435, %v437
        %v439 = vrot.slane %v431, %v438
        %v441 = vunpack.c.l.s4 1983009808
        %v442 = vunpack.c.0.s8 %v441
        %v443 = vlaneseq
        %v444 = vshrl.u32 %v443, 7
        %v445 = vsub.s32 %v442, %v444
        %v446 = vrot.slane %v432, %v445
        %v447 = vcombine.low %v404, %v410
        %v448 = vcombine.high %v404, %v410
        %v450 = vunpack.c.l.s4 1983009808
        %v451 = vunpack.c.0.s8 %v450
        %v452 = vlaneseq
        %v453 = vshrl.u32 %v452, 7
        %v454 = vsub.s32 %v451, %v453
        %v455 = vrot.slane %v447, %v454
        %v457 = vunpack.c.l.s4 1983009808
        %v458 = vunpack.c.0.s8 %v457
        %v459 = vlaneseq
        %v460 = vshrl.u32 %v459, 7
        %v461 = vsub.s32 %v458, %v460
        %v462 = vrot.slane %v448, %v461
        %v463 = vcombine.low %v407, %v413
        %v464 = vcombine.high %v407, %v413
        %v466 = vunpack.c.l.s4 1983009808
        %v467 = vunpack.c.0.s8 %v466
        %v468 = vlaneseq
        %v469 = vshrl.u32 %v468, 7
        %v470 = vsub.s32 %v467, %v469
        %v471 = vrot.slane %v463, %v470
        %v473 = vunpack.c.l.s4 1983009808
        %v474 = vunpack.c.0.s8 %v473
        %v475 = vlaneseq
        %v476 = vshrl.u32 %v475, 7
        %v477 = vsub.s32 %v474, %v476
        %v478 = vrot.slane %v464, %v477
        %v479 = vcombine.low %v423, %v439
        %v480 = vcombine.high %v423, %v439
        %v482 = vunpack.c.l.s4 1934713408
        %v483 = vunpack.c.0.s8 %v482
        %v484 = vlaneseq
        %v485 = vshrl.u32 %v484, 7
        %v486 = vsub.s32 %v483, %v485
        %v487 = vrot.slane %v479, %v486
        %v489 = vunpack.c.l.s4 1934713408
        %v490 = vunpack.c.0.s8 %v489
        %v491 = vlaneseq
        %v492 = vshrl.u32 %v491, 7
        %v493 = vsub.s32 %v490, %v492
        %v494 = vrot.slane %v480, %v493
        %v495 = vcombine.low %v430, %v446
        %v496 = vcombine.high %v430, %v446
        %v498 = vunpack.c.l.s4 1934713408
        %v499 = vunpack.c.0.s8 %v498
        %v500 = vlaneseq
        %v501 = vshrl.u32 %v500, 7
        %v502 = vsub.s32 %v499, %v501
        %v503 = vrot.slane %v495, %v502
        %v505 = vunpack.c.l.s4 1934713408
        %v506 = vunpack.c.0.s8 %v505
        %v507 = vlaneseq
        %v508 = vshrl.u32 %v507, 7
        %v509 = vsub.s32 %v506, %v508
        %v510 = vrot.slane %v496, %v509
        %v511 = vcombine.low %v455, %v471
        %v512 = vcombine.high %v455, %v471
        %v514 = vunpack.c.l.s4 1934713408
        %v515 = vunpack.c.0.s8 %v514
        %v516 = vlaneseq
        %v517 = vshrl.u32 %v516, 7
        %v518 = vsub.s32 %v515, %v517
        %v519 = vrot.slane %v511, %v518
        %v521 = vunpack.c.l.s4 1934713408
        %v522 = vunpack.c.0.s8 %v521
        %v523 = vlaneseq
        %v524 = vshrl.u32 %v523, 7
        %v525 = vsub.s32 %v522, %v524
        %v526 = vrot.slane %v512, %v525
        %v527 = vcombine.low %v462, %v478
        %v528 = vcombine.high %v462, %v478
        %v530 = vunpack.c.l.s4 1934713408
        %v531 = vunpack.c.0.s8 %v530
        %v532 = vlaneseq
        %v533 = vshrl.u32 %v532, 7
        %v534 = vsub.s32 %v531, %v533
        %v535 = vrot.slane %v527, %v534
        %v537 = vunpack.c.l.s4 1934713408
        %v538 = vunpack.c.0.s8 %v537
        %v539 = vlaneseq
        %v540 = vshrl.u32 %v539, 7
        %v541 = vsub.s32 %v538, %v540
        %v542 = vrot.slane %v528, %v541
        %v543 = vcombine.low %v487, %v519
        %v544 = vcombine.high %v487, %v519
        %v545 = vcombine.low %v494, %v526
        %v546 = vcombine.high %v494, %v526
        %v547 = vcombine.low %v503, %v535
        %v548 = vcombine.high %v503, %v535
        %v549 = vcombine.low %v510, %v542
        %v550 = vcombine.high %v510, %v542
        %v551 = vcombine.low %v543, %v545
        %v552 = vcombine.high %v543, %v545
        %v554 = vunpack.c.l.s4 1983009808
        %v555 = vunpack.c.0.s8 %v554
        %v556 = vlaneseq
        %v557 = vshrl.u32 %v556, 7
        %v558 = vsub.s32 %v555, %v557
        %v559 = vrot.slane %v551, %v558
        %v561 = vunpack.c.l.s4 1983009808
        %v562 = vunpack.c.0.s8 %v561
        %v563 = vlaneseq
        %v564 = vshrl.u32 %v563, 7
        %v565 = vsub.s32 %v562, %v564
        %v566 = vrot.slane %v552, %v565
        %v567 = vcombine.low %v544, %v546
        %v568 = vcombine.high %v544, %v546
        %v570 = vunpack.c.l.s4 1983009808
        %v571 = vunpack.c.0.s8 %v570
        %v572 = vlaneseq
        %v573 = vshrl.u32 %v572, 7
        %v574 = vsub.s32 %v571, %v573
        %v575 = vrot.slane %v567, %v574
        %v577 = vunpack.c.l.s4 1983009808
        %v578 = vunpack.c.0.s8 %v577
        %v579 = vlaneseq
        %v580 = vshrl.u32 %v579, 7
        %v581 = vsub.s32 %v578, %v580
        %v582 = vrot.slane %v568, %v581
        %v583 = vcombine.low %v547, %v549
        %v584 = vcombine.high %v547, %v549
        %v586 = vunpack.c.l.s4 1983009808
        %v587 = vunpack.c.0.s8 %v586
        %v588 = vlaneseq
        %v589 = vshrl.u32 %v588, 7
        %v590 = vsub.s32 %v587, %v589
        %v591 = vrot.slane %v583, %v590
        %v593 = vunpack.c.l.s4 1983009808
        %v594 = vunpack.c.0.s8 %v593
        %v595 = vlaneseq
        %v596 = vshrl.u32 %v595, 7
        %v597 = vsub.s32 %v594, %v596
        %v598 = vrot.slane %v584, %v597
        %v599 = vcombine.low %v548, %v550
        %v600 = vcombine.high %v548, %v550
        %v602 = vunpack.c.l.s4 1983009808
        %v603 = vunpack.c.0.s8 %v602
        %v604 = vlaneseq
        %v605 = vshrl.u32 %v604, 7
        %v606 = vsub.s32 %v603, %v605
        %v607 = vrot.slane %v599, %v606
        %v609 = vunpack.c.l.s4 1983009808
        %v610 = vunpack.c.0.s8 %v609
        %v611 = vlaneseq
        %v612 = vshrl.u32 %v611, 7
        %v613 = vsub.s32 %v610, %v612
        %v614 = vrot.slane %v600, %v613
        %v615 = vcombine.low %v559, %v575
        %v616 = vcombine.high %v559, %v575
        %v618 = vunpack.c.l.s4 1934713408
        %v619 = vunpack.c.0.s8 %v618
        %v620 = vlaneseq
        %v621 = vshrl.u32 %v620, 7
        %v622 = vsub.s32 %v619, %v621
        %v623 = vrot.slane %v615, %v622
        %v625 = vunpack.c.l.s4 1934713408
        %v626 = vunpack.c.0.s8 %v625
        %v627 = vlaneseq
        %v628 = vshrl.u32 %v627, 7
        %v629 = vsub.s32 %v626, %v628
        %v630 = vrot.slane %v616, %v629
        %v631 = vcombine.low %v566, %v582
        %v632 = vcombine.high %v566, %v582
        %v634 = vunpack.c.l.s4 1934713408
        %v635 = vunpack.c.0.s8 %v634
        %v636 = vlaneseq
        %v637 = vshrl.u32 %v636, 7
        %v638 = vsub.s32 %v635, %v637
        %v639 = vrot.slane %v631, %v638
        %v641 = vunpack.c.l.s4 1934713408
        %v642 = vunpack.c.0.s8 %v641
        %v643 = vlaneseq
        %v644 = vshrl.u32 %v643, 7
        %v645 = vsub.s32 %v642, %v644
        %v646 = vrot.slane %v632, %v645
        %v647 = vcombine.low %v591, %v607
        %v648 = vcombine.high %v591, %v607
        %v650 = vunpack.c.l.s4 1934713408
        %v651 = vunpack.c.0.s8 %v650
        %v652 = vlaneseq
        %v653 = vshrl.u32 %v652, 7
        %v654 = vsub.s32 %v651, %v653
        %v655 = vrot.slane %v647, %v654
        %v657 = vunpack.c.l.s4 1934713408
        %v658 = vunpack.c.0.s8 %v657
        %v659 = vlaneseq
        %v660 = vshrl.u32 %v659, 7
        %v661 = vsub.s32 %v658, %v660
        %v662 = vrot.slane %v648, %v661
        %v663 = vcombine.low %v598, %v614
        %v664 = vcombine.high %v598, %v614
        %v666 = vunpack.c.l.s4 1934713408
        %v667 = vunpack.c.0.s8 %v666
        %v668 = vlaneseq
        %v669 = vshrl.u32 %v668, 7
        %v670 = vsub.s32 %v667, %v669
        %v671 = vrot.slane %v663, %v670
        %v673 = vunpack.c.l.s4 1934713408
        %v674 = vunpack.c.0.s8 %v673
        %v675 = vlaneseq
        %v676 = vshrl.u32 %v675, 7
        %v677 = vsub.s32 %v674, %v676
        %v678 = vrot.slane %v664, %v677
        %v679 = vcombine.low %v623, %v655
        %v680 = vcombine.high %v623, %v655
        %v681 = vcombine.low %v630, %v662
        %v682 = vcombine.high %v630, %v662
        %v683 = vcombine.low %v639, %v671
        %v684 = vcombine.high %v639, %v671
        %v685 = vcombine.low %v646, %v678
        %v686 = vcombine.high %v646, %v678
        %vm687 = vcmask 31744
        %688 = vst.msk [vmem:[%s291] sm:$0xff] %vm687, %v679
        %689 = vst.msk [vmem:[%s291 + $0x8] sm:$0xff] %vm687, %v680
        %690 = vst.msk [vmem:[%s291 + $0x10] sm:$0xff] %vm687, %v681
        %691 = vst.msk [vmem:[%s291 + $0x18] sm:$0xff] %vm687, %v682
        %692 = vst.msk [vmem:[%s291 + $0x20] sm:$0xff] %vm687, %v683
        %693 = vst.msk [vmem:[%s291 + $0x28] sm:$0xff] %vm687, %v684
        %694 = vst.msk [vmem:[%s291 + $0x30] sm:$0xff] %vm687, %v685
        %695 = vst.msk [vmem:[%s291 + $0x38] sm:$0xff] %vm687, %v686
        %697 = vrot.lane.b32.xlu0 %v389, 124
        %v698 = vpop.permute.xlu0 %697
        %699 = vrot.lane.b32.xlu0 %v389, 120
        %v700 = vpop.permute.xlu0 %699
        %701 = vrot.lane.b32.xlu0 %v389, 116
        %v702 = vpop.permute.xlu0 %701
        %703 = vrot.lane.b32.xlu0 %v389, 112
        %v704 = vpop.permute.xlu0 %703
        %705 = vrot.lane.b32.xlu0 %v389, 108
        %v706 = vpop.permute.xlu0 %705
        %707 = vrot.lane.b32.xlu0 %v389, 104
        %v708 = vpop.permute.xlu0 %707
        %709 = vrot.lane.b32.xlu0 %v389, 100
        %v710 = vpop.permute.xlu0 %709
        %711 = vrot.lane.b32.xlu0 %v389, 96
        %v712 = vpop.permute.xlu0 %711
        %713 = vrot.lane.b32.xlu0 %v698, 96
        %v714 = vpop.permute.xlu0 %713
        %715 = vrot.lane.b32.xlu0 %v700, 96
        %v716 = vpop.permute.xlu0 %715
        %717 = vrot.lane.b32.xlu0 %v702, 96
        %v718 = vpop.permute.xlu0 %717
        %719 = vrot.lane.b32.xlu0 %v704, 96
        %v720 = vpop.permute.xlu0 %719
        %721 = vrot.lane.b32.xlu0 %v706, 96
        %v722 = vpop.permute.xlu0 %721
        %723 = vrot.lane.b32.xlu0 %v708, 96
        %v724 = vpop.permute.xlu0 %723
        %725 = vrot.lane.b32.xlu0 %v710, 96
        %v726 = vpop.permute.xlu0 %725
        %v735 = vcombine.low %v712, %v716
        %v736 = vcombine.high %v712, %v716
        %v738 = vunpack.c.l.s4 1983009808
        %v739 = vunpack.c.0.s8 %v738
        %v740 = vlaneseq
        %v741 = vshrl.u32 %v740, 7
        %v742 = vsub.s32 %v739, %v741
        %v743 = vrot.slane %v735, %v742
        %v745 = vunpack.c.l.s4 1983009808
        %v746 = vunpack.c.0.s8 %v745
        %v747 = vlaneseq
        %v748 = vshrl.u32 %v747, 7
        %v749 = vsub.s32 %v746, %v748
        %v750 = vrot.slane %v736, %v749
        %v751 = vcombine.low %v714, %v718
        %v752 = vcombine.high %v714, %v718
        %v754 = vunpack.c.l.s4 1983009808
        %v755 = vunpack.c.0.s8 %v754
        %v756 = vlaneseq
        %v757 = vshrl.u32 %v756, 7
        %v758 = vsub.s32 %v755, %v757
        %v759 = vrot.slane %v751, %v758
        %v761 = vunpack.c.l.s4 1983009808
        %v762 = vunpack.c.0.s8 %v761
        %v763 = vlaneseq
        %v764 = vshrl.u32 %v763, 7
        %v765 = vsub.s32 %v762, %v764
        %v766 = vrot.slane %v752, %v765
        %v767 = vcombine.low %v720, %v724
        %v768 = vcombine.high %v720, %v724
        %v770 = vunpack.c.l.s4 1983009808
        %v771 = vunpack.c.0.s8 %v770
        %v772 = vlaneseq
        %v773 = vshrl.u32 %v772, 7
        %v774 = vsub.s32 %v771, %v773
        %v775 = vrot.slane %v767, %v774
        %v777 = vunpack.c.l.s4 1983009808
        %v778 = vunpack.c.0.s8 %v777
        %v779 = vlaneseq
        %v780 = vshrl.u32 %v779, 7
        %v781 = vsub.s32 %v778, %v780
        %v782 = vrot.slane %v768, %v781
        %v783 = vcombine.low %v722, %v726
        %v784 = vcombine.high %v722, %v726
        %v786 = vunpack.c.l.s4 1983009808
        %v787 = vunpack.c.0.s8 %v786
        %v788 = vlaneseq
        %v789 = vshrl.u32 %v788, 7
        %v790 = vsub.s32 %v787, %v789
        %v791 = vrot.slane %v783, %v790
        %v793 = vunpack.c.l.s4 1983009808
        %v794 = vunpack.c.0.s8 %v793
        %v795 = vlaneseq
        %v796 = vshrl.u32 %v795, 7
        %v797 = vsub.s32 %v794, %v796
        %v798 = vrot.slane %v784, %v797
        %v799 = vcombine.low %v743, %v759
        %v800 = vcombine.high %v743, %v759
        %v802 = vunpack.c.l.s4 1934713408
        %v803 = vunpack.c.0.s8 %v802
        %v804 = vlaneseq
        %v805 = vshrl.u32 %v804, 7
        %v806 = vsub.s32 %v803, %v805
        %v807 = vrot.slane %v799, %v806
        %v809 = vunpack.c.l.s4 1934713408
        %v810 = vunpack.c.0.s8 %v809
        %v811 = vlaneseq
        %v812 = vshrl.u32 %v811, 7
        %v813 = vsub.s32 %v810, %v812
        %v814 = vrot.slane %v800, %v813
        %v815 = vcombine.low %v750, %v766
        %v816 = vcombine.high %v750, %v766
        %v818 = vunpack.c.l.s4 1934713408
        %v819 = vunpack.c.0.s8 %v818
        %v820 = vlaneseq
        %v821 = vshrl.u32 %v820, 7
        %v822 = vsub.s32 %v819, %v821
        %v823 = vrot.slane %v815, %v822
        %v825 = vunpack.c.l.s4 1934713408
        %v826 = vunpack.c.0.s8 %v825
        %v827 = vlaneseq
        %v828 = vshrl.u32 %v827, 7
        %v829 = vsub.s32 %v826, %v828
        %v830 = vrot.slane %v816, %v829
        %v831 = vcombine.low %v775, %v791
        %v832 = vcombine.high %v775, %v791
        %v834 = vunpack.c.l.s4 1934713408
        %v835 = vunpack.c.0.s8 %v834
        %v836 = vlaneseq
        %v837 = vshrl.u32 %v836, 7
        %v838 = vsub.s32 %v835, %v837
        %v839 = vrot.slane %v831, %v838
        %v841 = vunpack.c.l.s4 1934713408
        %v842 = vunpack.c.0.s8 %v841
        %v843 = vlaneseq
        %v844 = vshrl.u32 %v843, 7
        %v845 = vsub.s32 %v842, %v844
        %v846 = vrot.slane %v832, %v845
        %v847 = vcombine.low %v782, %v798
        %v848 = vcombine.high %v782, %v798
        %v850 = vunpack.c.l.s4 1934713408
        %v851 = vunpack.c.0.s8 %v850
        %v852 = vlaneseq
        %v853 = vshrl.u32 %v852, 7
        %v854 = vsub.s32 %v851, %v853
        %v855 = vrot.slane %v847, %v854
        %v857 = vunpack.c.l.s4 1934713408
        %v858 = vunpack.c.0.s8 %v857
        %v859 = vlaneseq
        %v860 = vshrl.u32 %v859, 7
        %v861 = vsub.s32 %v858, %v860
        %v862 = vrot.slane %v848, %v861
        %v863 = vcombine.low %v807, %v839
        %v864 = vcombine.high %v807, %v839
        %v865 = vcombine.low %v814, %v846
        %v866 = vcombine.high %v814, %v846
        %v867 = vcombine.low %v823, %v855
        %v868 = vcombine.high %v823, %v855
        %v869 = vcombine.low %v830, %v862
        %v870 = vcombine.high %v830, %v862
        %v871 = vcombine.low %v863, %v865
        %v872 = vcombine.high %v863, %v865
        %v874 = vunpack.c.l.s4 1983009808
        %v875 = vunpack.c.0.s8 %v874
        %v876 = vlaneseq
        %v877 = vshrl.u32 %v876, 7
        %v878 = vsub.s32 %v875, %v877
        %v879 = vrot.slane %v871, %v878
        %v881 = vunpack.c.l.s4 1983009808
        %v882 = vunpack.c.0.s8 %v881
        %v883 = vlaneseq
        %v884 = vshrl.u32 %v883, 7
        %v885 = vsub.s32 %v882, %v884
        %v886 = vrot.slane %v872, %v885
        %v887 = vcombine.low %v864, %v866
        %v888 = vcombine.high %v864, %v866
        %v890 = vunpack.c.l.s4 1983009808
        %v891 = vunpack.c.0.s8 %v890
        %v892 = vlaneseq
        %v893 = vshrl.u32 %v892, 7
        %v894 = vsub.s32 %v891, %v893
        %v895 = vrot.slane %v887, %v894
        %v897 = vunpack.c.l.s4 1983009808
        %v898 = vunpack.c.0.s8 %v897
        %v899 = vlaneseq
        %v900 = vshrl.u32 %v899, 7
        %v901 = vsub.s32 %v898, %v900
        %v902 = vrot.slane %v888, %v901
        %v903 = vcombine.low %v867, %v869
        %v904 = vcombine.high %v867, %v869
        %v906 = vunpack.c.l.s4 1983009808
        %v907 = vunpack.c.0.s8 %v906
        %v908 = vlaneseq
        %v909 = vshrl.u32 %v908, 7
        %v910 = vsub.s32 %v907, %v909
        %v911 = vrot.slane %v903, %v910
        %v913 = vunpack.c.l.s4 1983009808
        %v914 = vunpack.c.0.s8 %v913
        %v915 = vlaneseq
        %v916 = vshrl.u32 %v915, 7
        %v917 = vsub.s32 %v914, %v916
        %v918 = vrot.slane %v904, %v917
        %v919 = vcombine.low %v868, %v870
        %v920 = vcombine.high %v868, %v870
        %v922 = vunpack.c.l.s4 1983009808
        %v923 = vunpack.c.0.s8 %v922
        %v924 = vlaneseq
        %v925 = vshrl.u32 %v924, 7
        %v926 = vsub.s32 %v923, %v925
        %v927 = vrot.slane %v919, %v926
        %v929 = vunpack.c.l.s4 1983009808
        %v930 = vunpack.c.0.s8 %v929
        %v931 = vlaneseq
        %v932 = vshrl.u32 %v931, 7
        %v933 = vsub.s32 %v930, %v932
        %v934 = vrot.slane %v920, %v933
        %v935 = vcombine.low %v879, %v895
        %v936 = vcombine.high %v879, %v895
        %v938 = vunpack.c.l.s4 1934713408
        %v939 = vunpack.c.0.s8 %v938
        %v940 = vlaneseq
        %v941 = vshrl.u32 %v940, 7
        %v942 = vsub.s32 %v939, %v941
        %v943 = vrot.slane %v935, %v942
        %v945 = vunpack.c.l.s4 1934713408
        %v946 = vunpack.c.0.s8 %v945
        %v947 = vlaneseq
        %v948 = vshrl.u32 %v947, 7
        %v949 = vsub.s32 %v946, %v948
        %v950 = vrot.slane %v936, %v949
        %v951 = vcombine.low %v886, %v902
        %v952 = vcombine.high %v886, %v902
        %v954 = vunpack.c.l.s4 1934713408
        %v955 = vunpack.c.0.s8 %v954
        %v956 = vlaneseq
        %v957 = vshrl.u32 %v956, 7
        %v958 = vsub.s32 %v955, %v957
        %v959 = vrot.slane %v951, %v958
        %v961 = vunpack.c.l.s4 1934713408
        %v962 = vunpack.c.0.s8 %v961
        %v963 = vlaneseq
        %v964 = vshrl.u32 %v963, 7
        %v965 = vsub.s32 %v962, %v964
        %v966 = vrot.slane %v952, %v965
        %v967 = vcombine.low %v911, %v927
        %v968 = vcombine.high %v911, %v927
        %v970 = vunpack.c.l.s4 1934713408
        %v971 = vunpack.c.0.s8 %v970
        %v972 = vlaneseq
        %v973 = vshrl.u32 %v972, 7
        %v974 = vsub.s32 %v971, %v973
        %v975 = vrot.slane %v967, %v974
        %v977 = vunpack.c.l.s4 1934713408
        %v978 = vunpack.c.0.s8 %v977
        %v979 = vlaneseq
        %v980 = vshrl.u32 %v979, 7
        %v981 = vsub.s32 %v978, %v980
        %v982 = vrot.slane %v968, %v981
        %v983 = vcombine.low %v918, %v934
        %v984 = vcombine.high %v918, %v934
        %v986 = vunpack.c.l.s4 1934713408
        %v987 = vunpack.c.0.s8 %v986
        %v988 = vlaneseq
        %v989 = vshrl.u32 %v988, 7
        %v990 = vsub.s32 %v987, %v989
        %v991 = vrot.slane %v983, %v990
        %v993 = vunpack.c.l.s4 1934713408
        %v994 = vunpack.c.0.s8 %v993
        %v995 = vlaneseq
        %v996 = vshrl.u32 %v995, 7
        %v997 = vsub.s32 %v994, %v996
        %v998 = vrot.slane %v984, %v997
        %v999 = vcombine.low %v943, %v975
        %v1000 = vcombine.high %v943, %v975
        %v1001 = vcombine.low %v950, %v982
        %v1002 = vcombine.high %v950, %v982
        %v1003 = vcombine.low %v959, %v991
        %v1004 = vcombine.high %v959, %v991
        %v1005 = vcombine.low %v966, %v998
        %v1006 = vcombine.high %v966, %v998
        %1007 = vst.msk [vmem:[%s298] sm:$0xff] %vm687, %v999
        %1008 = vst.msk [vmem:[%s298 + $0x8] sm:$0xff] %vm687, %v1000
        %1009 = vst.msk [vmem:[%s298 + $0x10] sm:$0xff] %vm687, %v1001
        %1010 = vst.msk [vmem:[%s298 + $0x18] sm:$0xff] %vm687, %v1002
        %1011 = vst.msk [vmem:[%s298 + $0x20] sm:$0xff] %vm687, %v1003
        %1012 = vst.msk [vmem:[%s298 + $0x28] sm:$0xff] %vm687, %v1004
        %1013 = vst.msk [vmem:[%s298 + $0x30] sm:$0xff] %vm687, %v1005
        %1014 = vst.msk [vmem:[%s298 + $0x38] sm:$0xff] %vm687, %v1006
        %1015 = vrot.lane.b32.xlu0 %v389, 64
        %v1016 = vpop.permute.xlu0 %1015
        %1017 = vrot.lane.b32.xlu0 %v698, 64
        %v1018 = vpop.permute.xlu0 %1017
        %1019 = vrot.lane.b32.xlu0 %v700, 64
        %v1020 = vpop.permute.xlu0 %1019
        %1021 = vrot.lane.b32.xlu0 %v702, 64
        %v1022 = vpop.permute.xlu0 %1021
        %1023 = vrot.lane.b32.xlu0 %v704, 64
        %v1024 = vpop.permute.xlu0 %1023
        %1025 = vrot.lane.b32.xlu0 %v706, 64
        %v1026 = vpop.permute.xlu0 %1025
        %1027 = vrot.lane.b32.xlu0 %v708, 64
        %v1028 = vpop.permute.xlu0 %1027
        %1029 = vrot.lane.b32.xlu0 %v710, 64
        %v1030 = vpop.permute.xlu0 %1029
        %v1039 = vcombine.low %v1016, %v1020
        %v1040 = vcombine.high %v1016, %v1020
        %v1042 = vunpack.c.l.s4 1983009808
        %v1043 = vunpack.c.0.s8 %v1042
        %v1044 = vlaneseq
        %v1045 = vshrl.u32 %v1044, 7
        %v1046 = vsub.s32 %v1043, %v1045
        %v1047 = vrot.slane %v1039, %v1046
        %v1049 = vunpack.c.l.s4 1983009808
        %v1050 = vunpack.c.0.s8 %v1049
        %v1051 = vlaneseq
        %v1052 = vshrl.u32 %v1051, 7
        %v1053 = vsub.s32 %v1050, %v1052
        %v1054 = vrot.slane %v1040, %v1053
        %v1055 = vcombine.low %v1018, %v1022
        %v1056 = vcombine.high %v1018, %v1022
        %v1058 = vunpack.c.l.s4 1983009808
        %v1059 = vunpack.c.0.s8 %v1058
        %v1060 = vlaneseq
        %v1061 = vshrl.u32 %v1060, 7
        %v1062 = vsub.s32 %v1059, %v1061
        %v1063 = vrot.slane %v1055, %v1062
        %v1065 = vunpack.c.l.s4 1983009808
        %v1066 = vunpack.c.0.s8 %v1065
        %v1067 = vlaneseq
        %v1068 = vshrl.u32 %v1067, 7
        %v1069 = vsub.s32 %v1066, %v1068
        %v1070 = vrot.slane %v1056, %v1069
        %v1071 = vcombine.low %v1024, %v1028
        %v1072 = vcombine.high %v1024, %v1028
        %v1074 = vunpack.c.l.s4 1983009808
        %v1075 = vunpack.c.0.s8 %v1074
        %v1076 = vlaneseq
        %v1077 = vshrl.u32 %v1076, 7
        %v1078 = vsub.s32 %v1075, %v1077
        %v1079 = vrot.slane %v1071, %v1078
        %v1081 = vunpack.c.l.s4 1983009808
        %v1082 = vunpack.c.0.s8 %v1081
        %v1083 = vlaneseq
        %v1084 = vshrl.u32 %v1083, 7
        %v1085 = vsub.s32 %v1082, %v1084
        %v1086 = vrot.slane %v1072, %v1085
        %v1087 = vcombine.low %v1026, %v1030
        %v1088 = vcombine.high %v1026, %v1030
        %v1090 = vunpack.c.l.s4 1983009808
        %v1091 = vunpack.c.0.s8 %v1090
        %v1092 = vlaneseq
        %v1093 = vshrl.u32 %v1092, 7
        %v1094 = vsub.s32 %v1091, %v1093
        %v1095 = vrot.slane %v1087, %v1094
        %v1097 = vunpack.c.l.s4 1983009808
        %v1098 = vunpack.c.0.s8 %v1097
        %v1099 = vlaneseq
        %v1100 = vshrl.u32 %v1099, 7
        %v1101 = vsub.s32 %v1098, %v1100
        %v1102 = vrot.slane %v1088, %v1101
        %v1103 = vcombine.low %v1047, %v1063
        %v1104 = vcombine.high %v1047, %v1063
        %v1106 = vunpack.c.l.s4 1934713408
        %v1107 = vunpack.c.0.s8 %v1106
        %v1108 = vlaneseq
        %v1109 = vshrl.u32 %v1108, 7
        %v1110 = vsub.s32 %v1107, %v1109
        %v1111 = vrot.slane %v1103, %v1110
        %v1113 = vunpack.c.l.s4 1934713408
        %v1114 = vunpack.c.0.s8 %v1113
        %v1115 = vlaneseq
        %v1116 = vshrl.u32 %v1115, 7
        %v1117 = vsub.s32 %v1114, %v1116
        %v1118 = vrot.slane %v1104, %v1117
        %v1119 = vcombine.low %v1054, %v1070
        %v1120 = vcombine.high %v1054, %v1070
        %v1122 = vunpack.c.l.s4 1934713408
        %v1123 = vunpack.c.0.s8 %v1122
        %v1124 = vlaneseq
        %v1125 = vshrl.u32 %v1124, 7
        %v1126 = vsub.s32 %v1123, %v1125
        %v1127 = vrot.slane %v1119, %v1126
        %v1129 = vunpack.c.l.s4 1934713408
        %v1130 = vunpack.c.0.s8 %v1129
        %v1131 = vlaneseq
        %v1132 = vshrl.u32 %v1131, 7
        %v1133 = vsub.s32 %v1130, %v1132
        %v1134 = vrot.slane %v1120, %v1133
        %v1135 = vcombine.low %v1079, %v1095
        %v1136 = vcombine.high %v1079, %v1095
        %v1138 = vunpack.c.l.s4 1934713408
        %v1139 = vunpack.c.0.s8 %v1138
        %v1140 = vlaneseq
        %v1141 = vshrl.u32 %v1140, 7
        %v1142 = vsub.s32 %v1139, %v1141
        %v1143 = vrot.slane %v1135, %v1142
        %v1145 = vunpack.c.l.s4 1934713408
        %v1146 = vunpack.c.0.s8 %v1145
        %v1147 = vlaneseq
        %v1148 = vshrl.u32 %v1147, 7
        %v1149 = vsub.s32 %v1146, %v1148
        %v1150 = vrot.slane %v1136, %v1149
        %v1151 = vcombine.low %v1086, %v1102
        %v1152 = vcombine.high %v1086, %v1102
        %v1154 = vunpack.c.l.s4 1934713408
        %v1155 = vunpack.c.0.s8 %v1154
        %v1156 = vlaneseq
        %v1157 = vshrl.u32 %v1156, 7
        %v1158 = vsub.s32 %v1155, %v1157
        %v1159 = vrot.slane %v1151, %v1158
        %v1161 = vunpack.c.l.s4 1934713408
        %v1162 = vunpack.c.0.s8 %v1161
        %v1163 = vlaneseq
        %v1164 = vshrl.u32 %v1163, 7
        %v1165 = vsub.s32 %v1162, %v1164
        %v1166 = vrot.slane %v1152, %v1165
        %v1167 = vcombine.low %v1111, %v1143
        %v1168 = vcombine.high %v1111, %v1143
        %v1169 = vcombine.low %v1118, %v1150
        %v1170 = vcombine.high %v1118, %v1150
        %v1171 = vcombine.low %v1127, %v1159
        %v1172 = vcombine.high %v1127, %v1159
        %v1173 = vcombine.low %v1134, %v1166
        %v1174 = vcombine.high %v1134, %v1166
        %v1175 = vcombine.low %v1167, %v1169
        %v1176 = vcombine.high %v1167, %v1169
        %v1178 = vunpack.c.l.s4 1983009808
        %v1179 = vunpack.c.0.s8 %v1178
        %v1180 = vlaneseq
        %v1181 = vshrl.u32 %v1180, 7
        %v1182 = vsub.s32 %v1179, %v1181
        %v1183 = vrot.slane %v1175, %v1182
        %v1185 = vunpack.c.l.s4 1983009808
        %v1186 = vunpack.c.0.s8 %v1185
        %v1187 = vlaneseq
        %v1188 = vshrl.u32 %v1187, 7
        %v1189 = vsub.s32 %v1186, %v1188
        %v1190 = vrot.slane %v1176, %v1189
        %v1191 = vcombine.low %v1168, %v1170
        %v1192 = vcombine.high %v1168, %v1170
        %v1194 = vunpack.c.l.s4 1983009808
        %v1195 = vunpack.c.0.s8 %v1194
        %v1196 = vlaneseq
        %v1197 = vshrl.u32 %v1196, 7
        %v1198 = vsub.s32 %v1195, %v1197
        %v1199 = vrot.slane %v1191, %v1198
        %v1201 = vunpack.c.l.s4 1983009808
        %v1202 = vunpack.c.0.s8 %v1201
        %v1203 = vlaneseq
        %v1204 = vshrl.u32 %v1203, 7
        %v1205 = vsub.s32 %v1202, %v1204
        %v1206 = vrot.slane %v1192, %v1205
        %v1207 = vcombine.low %v1171, %v1173
        %v1208 = vcombine.high %v1171, %v1173
        %v1210 = vunpack.c.l.s4 1983009808
        %v1211 = vunpack.c.0.s8 %v1210
        %v1212 = vlaneseq
        %v1213 = vshrl.u32 %v1212, 7
        %v1214 = vsub.s32 %v1211, %v1213
        %v1215 = vrot.slane %v1207, %v1214
        %v1217 = vunpack.c.l.s4 1983009808
        %v1218 = vunpack.c.0.s8 %v1217
        %v1219 = vlaneseq
        %v1220 = vshrl.u32 %v1219, 7
        %v1221 = vsub.s32 %v1218, %v1220
        %v1222 = vrot.slane %v1208, %v1221
        %v1223 = vcombine.low %v1172, %v1174
        %v1224 = vcombine.high %v1172, %v1174
        %v1226 = vunpack.c.l.s4 1983009808
        %v1227 = vunpack.c.0.s8 %v1226
        %v1228 = vlaneseq
        %v1229 = vshrl.u32 %v1228, 7
        %v1230 = vsub.s32 %v1227, %v1229
        %v1231 = vrot.slane %v1223, %v1230
        %v1233 = vunpack.c.l.s4 1983009808
        %v1234 = vunpack.c.0.s8 %v1233
        %v1235 = vlaneseq
        %v1236 = vshrl.u32 %v1235, 7
        %v1237 = vsub.s32 %v1234, %v1236
        %v1238 = vrot.slane %v1224, %v1237
        %v1239 = vcombine.low %v1183, %v1199
        %v1240 = vcombine.high %v1183, %v1199
        %v1242 = vunpack.c.l.s4 1934713408
        %v1243 = vunpack.c.0.s8 %v1242
        %v1244 = vlaneseq
        %v1245 = vshrl.u32 %v1244, 7
        %v1246 = vsub.s32 %v1243, %v1245
        %v1247 = vrot.slane %v1239, %v1246
        %v1249 = vunpack.c.l.s4 1934713408
        %v1250 = vunpack.c.0.s8 %v1249
        %v1251 = vlaneseq
        %v1252 = vshrl.u32 %v1251, 7
        %v1253 = vsub.s32 %v1250, %v1252
        %v1254 = vrot.slane %v1240, %v1253
        %v1255 = vcombine.low %v1190, %v1206
        %v1256 = vcombine.high %v1190, %v1206
        %v1258 = vunpack.c.l.s4 1934713408
        %v1259 = vunpack.c.0.s8 %v1258
        %v1260 = vlaneseq
        %v1261 = vshrl.u32 %v1260, 7
        %v1262 = vsub.s32 %v1259, %v1261
        %v1263 = vrot.slane %v1255, %v1262
        %v1265 = vunpack.c.l.s4 1934713408
        %v1266 = vunpack.c.0.s8 %v1265
        %v1267 = vlaneseq
        %v1268 = vshrl.u32 %v1267, 7
        %v1269 = vsub.s32 %v1266, %v1268
        %v1270 = vrot.slane %v1256, %v1269
        %v1271 = vcombine.low %v1215, %v1231
        %v1272 = vcombine.high %v1215, %v1231
        %v1274 = vunpack.c.l.s4 1934713408
        %v1275 = vunpack.c.0.s8 %v1274
        %v1276 = vlaneseq
        %v1277 = vshrl.u32 %v1276, 7
        %v1278 = vsub.s32 %v1275, %v1277
        %v1279 = vrot.slane %v1271, %v1278
        %v1281 = vunpack.c.l.s4 1934713408
        %v1282 = vunpack.c.0.s8 %v1281
        %v1283 = vlaneseq
        %v1284 = vshrl.u32 %v1283, 7
        %v1285 = vsub.s32 %v1282, %v1284
        %v1286 = vrot.slane %v1272, %v1285
        %v1287 = vcombine.low %v1222, %v1238
        %v1288 = vcombine.high %v1222, %v1238
        %v1290 = vunpack.c.l.s4 1934713408
        %v1291 = vunpack.c.0.s8 %v1290
        %v1292 = vlaneseq
        %v1293 = vshrl.u32 %v1292, 7
        %v1294 = vsub.s32 %v1291, %v1293
        %v1295 = vrot.slane %v1287, %v1294
        %v1297 = vunpack.c.l.s4 1934713408
        %v1298 = vunpack.c.0.s8 %v1297
        %v1299 = vlaneseq
        %v1300 = vshrl.u32 %v1299, 7
        %v1301 = vsub.s32 %v1298, %v1300
        %v1302 = vrot.slane %v1288, %v1301
        %v1303 = vcombine.low %v1247, %v1279
        %v1304 = vcombine.high %v1247, %v1279
        %v1305 = vcombine.low %v1254, %v1286
        %v1306 = vcombine.high %v1254, %v1286
        %v1307 = vcombine.low %v1263, %v1295
        %v1308 = vcombine.high %v1263, %v1295
        %v1309 = vcombine.low %v1270, %v1302
        %v1310 = vcombine.high %v1270, %v1302
        %1311 = vst.msk [vmem:[%s305] sm:$0xff] %vm687, %v1303
        %1312 = vst.msk [vmem:[%s305 + $0x8] sm:$0xff] %vm687, %v1304
        %1313 = vst.msk [vmem:[%s305 + $0x10] sm:$0xff] %vm687, %v1305
        %1314 = vst.msk [vmem:[%s305 + $0x18] sm:$0xff] %vm687, %v1306
        %1315 = vst.msk [vmem:[%s305 + $0x20] sm:$0xff] %vm687, %v1307
        %1316 = vst.msk [vmem:[%s305 + $0x28] sm:$0xff] %vm687, %v1308
        %1317 = vst.msk [vmem:[%s305 + $0x30] sm:$0xff] %vm687, %v1309
        %1318 = vst.msk [vmem:[%s305 + $0x38] sm:$0xff] %vm687, %v1310
        %s1319 = sand.u32 %s119, 1
        %s1320 = scalar_lea.sflag [#allocation4], %s1319
        %s1321 = sand.u32 %s119, 1
        %s1322 = smul.addr %s1321, 64
        %s1323 = scalar_lea.vmem [#allocation8], %s1322
        %s1324 = sand.u32 %s27, 1
        %s1325 = scalar_lea.sflag [#allocation10], %s1324
        %s1326 = sand.u32 %s147, 1
        %s1327 = smul.addr %s1326, 64
        %s1328 = scalar_lea.vmem [#allocation9], %s1327
        %s1329 = sand.u32 %s27, 1
        %s1330 = scalar_lea.sflag [#allocation10], %s1329
        %s1331 = sand.u32 %s175, 1
        %s1332 = smul.addr %s1331, 64
        %s1333 = scalar_lea.vmem [#allocation11], %s1332
        // Predicated region
        $region45: #{tpu_custom_call.1} parent=31 // pred_check
          %p1334 = pneg %p129
        $region46: #{tpu_custom_call.1} parent=31 // pred_check_branch
          %1336 = sbr.rel (%p1334) target = $region48
        $region47: #{tpu_custom_call.1} parent=31 // pred_region
          %s1338 = ssub.s32 1024, 1024
          %1339 = vsyncadd %s1320, %s1338
          %s1340 = smul.addr %s31, 8
          %s1341 = sadd.s32 %s32, %s1340
          %s1342 = smul.addr %s1341, 128
          %s1343 = scalar_lea.hbm %s3, %s1342
          %s1344 = sshll.u32 %s1323, 4
          %s1345 = int_to_ptr.vmem [resolvable:$true] %s1344
          %1350 = dma.vmem_to_hbm [thread:$0]  %s1345, 1024, %s1343, %s1320, 128, 128, 8
        $region48: #{tpu_custom_call.1} parent=31 // pred_fallthru
          _
        // Predicated region
        $region49: #{tpu_custom_call.1} parent=31 // pred_check
          %p1351 = pneg %p157
        $region50: #{tpu_custom_call.1} parent=31 // pred_check_branch
          %1353 = sbr.rel (%p1351) target = $region52
        $region51: #{tpu_custom_call.1} parent=31 // pred_region
          %s1355 = ssub.s32 1024, 1024
          %1356 = vsyncadd %s1325, %s1355
          %s1357 = smul.addr %s31, 8
          %s1358 = sadd.s32 %s32, %s1357
          %s1359 = smul.addr %s1358, 128
          %s1360 = scalar_lea.hbm %s4, %s1359
          %s1361 = sshll.u32 %s1328, 4
          %s1362 = int_to_ptr.vmem [resolvable:$true] %s1361
          %1367 = dma.vmem_to_hbm [thread:$0]  %s1362, 1024, %s1360, %s1325, 128, 128, 8
        $region52: #{tpu_custom_call.1} parent=31 // pred_fallthru
          _
        // Predicated region
        $region53: #{tpu_custom_call.1} parent=31 // pred_check
          %p1368 = pneg %p185
        $region54: #{tpu_custom_call.1} parent=31 // pred_check_branch
          %1370 = sbr.rel (%p1368) target = $region56
        $region55: #{tpu_custom_call.1} parent=31 // pred_region
          %s1372 = ssub.s32 1024, 1024
          %1373 = vsyncadd %s1330, %s1372
          %s1374 = smul.addr %s31, 8
          %s1375 = sadd.s32 %s32, %s1374
          %s1376 = smul.addr %s1375, 128
          %s1377 = scalar_lea.hbm %s5, %s1376
          %s1378 = sshll.u32 %s1333, 4
          %s1379 = int_to_ptr.vmem [resolvable:$true] %s1378
          %1384 = dma.vmem_to_hbm [thread:$0]  %s1379, 1024, %s1377, %s1330, 128, 128, 8
        $region56: #{tpu_custom_call.1} parent=31 // pred_fallthru
          _
      $region32: #{tpu_custom_call.1} parent=5 // pred_fallthru
        _
      %p1385 = scmp.le.s32.totalorder 2, %s22
      // Predicated region
      $region57: #{tpu_custom_call.1} parent=5 // pred_check
        %p1386 = pneg %p1385
      $region58: #{tpu_custom_call.1} parent=5 // pred_check_branch
        %1388 = sbr.rel (%p1386) target = $region60
      $region59: #{tpu_custom_call.1} parent=5 // pred_region
        %s1389 = ssub.s32 %s22, 2
        // Predicated region
        $region61: #{tpu_custom_call.1} parent=59 // pred_check
          %p1390 = pneg %p135
        $region62: #{tpu_custom_call.1} parent=59 // pred_check_branch
          %1392 = sbr.rel (%p1390) target = $region64
        $region63: #{tpu_custom_call.1} parent=59 // pred_region
          %s1393 = sand.u32 %s120, 1
          %s1394 = scalar_lea.sflag [#allocation4], %s1393
          %s1395 = sand.u32 %s120, 1
          %s1396 = smul.addr %s1395, 64
          %s1397 = scalar_lea.vmem [#allocation8], %s1396
          %1398 = dma.done %s1394, 1024
        $region64: #{tpu_custom_call.1} parent=59 // pred_fallthru
          _
        // Predicated region
        $region65: #{tpu_custom_call.1} parent=59 // pred_check
          %p1399 = pneg %p163
        $region66: #{tpu_custom_call.1} parent=59 // pred_check_branch
          %1401 = sbr.rel (%p1399) target = $region68
        $region67: #{tpu_custom_call.1} parent=59 // pred_region
          %s1402 = sand.u32 %s28, 1
          %s1403 = scalar_lea.sflag [#allocation10], %s1402
          %s1404 = sand.u32 %s148, 1
          %s1405 = smul.addr %s1404, 64
          %s1406 = scalar_lea.vmem [#allocation9], %s1405
          %1407 = dma.done %s1403, 1024
        $region68: #{tpu_custom_call.1} parent=59 // pred_fallthru
          _
        // Predicated region
        $region69: #{tpu_custom_call.1} parent=59 // pred_check
          %p1408 = pneg %p191
        $region70: #{tpu_custom_call.1} parent=59 // pred_check_branch
          %1410 = sbr.rel (%p1408) target = $region72
        $region71: #{tpu_custom_call.1} parent=59 // pred_region
          %s1411 = sand.u32 %s28, 1
          %s1412 = scalar_lea.sflag [#allocation10], %s1411
          %s1413 = sand.u32 %s176, 1
          %s1414 = smul.addr %s1413, 64
          %s1415 = scalar_lea.vmem [#allocation11], %s1414
          %1416 = dma.done %s1412, 1024
        $region72: #{tpu_custom_call.1} parent=59 // pred_fallthru
          _
      $region60: #{tpu_custom_call.1} parent=5 // pred_fallthru
        _
    $region6: #{tpu_custom_call.1} parent=1 // loop_footer
      %s26 = sadd.s32 1, %s22
    $region7: #{tpu_custom_call.1} parent=1 // loop_footer_branch
      %21 = sbr.rel target = $region3
    $region8: #{tpu_custom_call.1} parent=1 // loop_exit
      _
    %1417 = vsyncpa [#allocation3], 1
    %s1418 = scalar_lea.sflag [#allocation3], 1
    %1419 = vsyncpa %s1418, 1
    %1420 = vsyncpa [#allocation6], 1
    %1421 = vsyncpa [#allocation4], 1
    %s1422 = scalar_lea.sflag [#allocation4], 1
    %1423 = vsyncpa %s1422, 1
    %1424 = vsyncpa [#allocation10], 1
    %s1425 = scalar_lea.sflag [#allocation10], 1
    %1426 = vsyncpa %s1425, 1

</llo_original>
